<compile_context>
chip_gen: v7x
topology: tpu7x:2x2x1
jax: 0.10.0
libtpu: 0.0.40
codegen_flags: <defaults>
</compile_context>

<pallas_src>
import jax
import jax.numpy as jnp
from jax.experimental import pallas as pl
from jax.experimental.pallas import tpu as pltpu

_LANE = 128
_SUBLANE = 8


def _round_up(n, m):
    return ((n + m - 1) // m) * m


def encoder_kernel(p_ref, x_ref, o_ref):
    """p_ref: SMEM (12,) f32 = [w1 (out,in row-major x4), b1 (x2), w2 (x4), b2 (x2)]
    x_ref : VMEM (2, tile_rows, 128) f32  (features major, batch on sublanes+lanes)
    o_ref : VMEM (2, tile_rows, 128) f32
    """
    # Full (tile_rows, 128) slabs: dense (8,128) vregs, no masked stores.
    x0 = x_ref[0]
    x1 = x_ref[1]

    # fc1 parameters (PyTorch layout: w[out, in]) read as SMEM scalars.
    w1_00, w1_01, w1_10, w1_11 = p_ref[0], p_ref[1], p_ref[2], p_ref[3]
    b1_0, b1_1 = p_ref[4], p_ref[5]
    # fc2 parameters.
    w2_00, w2_01, w2_10, w2_11 = p_ref[6], p_ref[7], p_ref[8], p_ref[9]
    b2_0, b2_1 = p_ref[10], p_ref[11]

    def sigmoid(z):
        # Single EUP tanh push instead of exp + divide; matches exact sigmoid to ~1e-7.
        return 0.5 * (jnp.tanh(0.5 * z) + 1.0)

    # Layer 1: h = sigmoid(W1 @ x + b1) — unrolled VPU multiply-adds (2-wide contraction).
    h0 = sigmoid(x0 * w1_00 + x1 * w1_01 + b1_0)
    h1 = sigmoid(x0 * w1_10 + x1 * w1_11 + b1_1)

    # Layer 2: y = sigmoid(W2 @ h + b2).
    y0 = sigmoid(h0 * w2_00 + h1 * w2_01 + b2_0)
    y1 = sigmoid(h0 * w2_10 + h1 * w2_11 + b2_1)

    o_ref[0] = y0.astype(o_ref.dtype)
    o_ref[1] = y1.astype(o_ref.dtype)


def encoder_forward(x, w1, b1, w2, b2, *, tile_rows=1024):
    """x: (B, 2); w1, w2: (2, 2) PyTorch-style (out_features, in_features); b: (2,)."""
    B, f_in = x.shape
    f_out = w2.shape[0]

    # Pack the 12 parameter scalars into a single SMEM table (48 bytes; pads to 64B).
    params = jnp.concatenate([
        jnp.asarray(w1, jnp.float32).reshape(-1),
        jnp.asarray(b1, jnp.float32).reshape(-1),
        jnp.asarray(w2, jnp.float32).reshape(-1),
        jnp.asarray(b2, jnp.float32).reshape(-1),
    ])

    # Batch on sublanes+lanes: (B, F) -> (F, B) -> pad -> (F, rows, 128).
    rows = pl.cdiv(B, _LANE)
    # tile_rows=1024 -> ~1 MiB input block per step; small batches collapse to one step.
    tile_rows = max(_SUBLANE,
                    min(_round_up(tile_rows, _SUBLANE), _round_up(rows, _SUBLANE)))
    rows_pad = _round_up(rows, tile_rows)
    b_pad = rows_pad * _LANE

    x_t = jnp.asarray(x, jnp.float32).T                       # (F_in, B)
    if b_pad != B:
        # TODO(synk): could drop this pad pass with a non-divisible grid + masked
        # writeback, at the cost of trusting partial-block boundary semantics.
        x_t = jnp.pad(x_t, ((0, 0), (0, b_pad - B)))
    x_t = x_t.reshape(f_in, rows_pad, _LANE)                  # free row-major reshape

    out_t = pl.pallas_call(
        encoder_kernel,
        out_shape=jax.ShapeDtypeStruct((f_out, rows_pad, _LANE), jnp.float32),
        grid=(rows_pad // tile_rows,),
        in_specs=[
            pl.BlockSpec(memory_space=pltpu.MemorySpace.SMEM),          # packed params
            pl.BlockSpec((f_in, tile_rows, _LANE), lambda i: (0, i, 0)),  # x tile
        ],
        out_specs=pl.BlockSpec((f_out, tile_rows, _LANE), lambda i: (0, i, 0)),
        compiler_params=pltpu.CompilerParams(
            # Independent batch tiles -> shard across v7x's two TensorCores;
            # harmless no-op on single-TC v5e/v6e.
            dimension_semantics=("parallel",),
        ),
    )(params, x_t)

    return out_t.reshape(f_out, b_pad)[:, :B].T               # back to (B, F_out)


if __name__ == "__main__":
    key = jax.random.PRNGKey(0)
    k_x, k_w1, k_b1, k_w2, k_b2 = jax.random.split(key, 5)

    # Module: Linear(2, 2) -> sigmoid -> Linear(2, 2) -> sigmoid.
    # B=1000 exercises batch padding (-> 1024 = 8 rows of 128) and collapses to a
    # single full-vreg grid step.
    B = 1000
    x = jax.random.normal(k_x, (B, 2), dtype=jnp.float32)
    # PyTorch-style parameter shapes: weight (out_features, in_features).
    w1 = jax.random.uniform(k_w1, (2, 2), jnp.float32, -0.5, 0.5)
    b1 = jax.random.uniform(k_b1, (2,), jnp.float32, -0.5, 0.5)
    w2 = jax.random.uniform(k_w2, (2, 2), jnp.float32, -0.5, 0.5)
    b2 = jax.random.uniform(k_b2, (2,), jnp.float32, -0.5, 0.5)

    out = encoder_forward(x, w1, b1, w2, b2)
    out = jax.block_until_ready(out)

    # Reference check in plain JAX (same math as the PyTorch module).
    ref = jax.nn.sigmoid(x @ w1.T + b1)
    ref = jax.nn.sigmoid(ref @ w2.T + b2)
    assert out.shape == ref.shape
    assert jnp.allclose(out, ref, atol=1e-5, rtol=1e-5), "mismatch vs reference"

    print("KERNEL_OK")
</pallas_src>

<mosaic_0001>
module attributes {stable_mosaic.version = 11 : i64} {
  func.func @encoder_kernel(%arg0: i32, %arg1: memref<12xf32, #tpu.memory_space<smem>>, %arg2: memref<2x8x128xf32, #tpu.memory_space<vmem>>, %arg3: memref<2x8x128xf32, #tpu.memory_space<vmem>>) attributes {dimension_semantics = [#tpu.dimension_semantics<parallel>], iteration_bounds = array<i64: 1>, scalar_prefetch = 0 : i64, scratch_operands = 0 : i64, tpu.core_type = #tpu.core_type<tc>, window_params = [{transform_indices = @transform_0, window_bounds = array<i64: 12>}, {transform_indices = @transform_1, window_bounds = array<i64: 2, 8, 128>}, {transform_indices = @transform_2, window_bounds = array<i64: 2, 8, 128>}]} {
    %c0 = arith.constant 0 : index
    %c0_0 = arith.constant 0 : index
    %c0_1 = arith.constant 0 : index
    %0 = vector.load %arg2[%c0, %c0_0, %c0_1] : memref<2x8x128xf32, #tpu.memory_space<vmem>>, vector<1x8x128xf32>
    %1 = vector.shape_cast %0 : vector<1x8x128xf32> to vector<8x128xf32>
    %c1 = arith.constant 1 : index
    %c0_2 = arith.constant 0 : index
    %c0_3 = arith.constant 0 : index
    %2 = vector.load %arg2[%c1, %c0_2, %c0_3] : memref<2x8x128xf32, #tpu.memory_space<vmem>>, vector<1x8x128xf32>
    %3 = vector.shape_cast %2 : vector<1x8x128xf32> to vector<8x128xf32>
    %c0_4 = arith.constant 0 : index
    %4 = memref.load %arg1[%c0_4] : memref<12xf32, #tpu.memory_space<smem>>
    %c1_5 = arith.constant 1 : index
    %5 = memref.load %arg1[%c1_5] : memref<12xf32, #tpu.memory_space<smem>>
    %c2 = arith.constant 2 : index
    %6 = memref.load %arg1[%c2] : memref<12xf32, #tpu.memory_space<smem>>
    %c3 = arith.constant 3 : index
    %7 = memref.load %arg1[%c3] : memref<12xf32, #tpu.memory_space<smem>>
    %c4 = arith.constant 4 : index
    %8 = memref.load %arg1[%c4] : memref<12xf32, #tpu.memory_space<smem>>
    %c5 = arith.constant 5 : index
    %9 = memref.load %arg1[%c5] : memref<12xf32, #tpu.memory_space<smem>>
    %c6 = arith.constant 6 : index
    %10 = memref.load %arg1[%c6] : memref<12xf32, #tpu.memory_space<smem>>
    %c7 = arith.constant 7 : index
    %11 = memref.load %arg1[%c7] : memref<12xf32, #tpu.memory_space<smem>>
    %c8 = arith.constant 8 : index
    %12 = memref.load %arg1[%c8] : memref<12xf32, #tpu.memory_space<smem>>
    %c9 = arith.constant 9 : index
    %13 = memref.load %arg1[%c9] : memref<12xf32, #tpu.memory_space<smem>>
    %c10 = arith.constant 10 : index
    %14 = memref.load %arg1[%c10] : memref<12xf32, #tpu.memory_space<smem>>
    %c11 = arith.constant 11 : index
    %15 = memref.load %arg1[%c11] : memref<12xf32, #tpu.memory_space<smem>>
    %16 = vector.broadcast %4 : f32 to vector<8x128xf32>
    %17 = arith.mulf %1, %16 : vector<8x128xf32>
    %18 = vector.broadcast %5 : f32 to vector<8x128xf32>
    %19 = arith.mulf %3, %18 : vector<8x128xf32>
    %20 = arith.addf %17, %19 : vector<8x128xf32>
    %21 = vector.broadcast %8 : f32 to vector<8x128xf32>
    %22 = arith.addf %20, %21 : vector<8x128xf32>
    %cst = arith.constant 5.000000e-01 : f32
    %23 = vector.broadcast %cst : f32 to vector<8x128xf32>
    %24 = arith.mulf %23, %22 : vector<8x128xf32>
    %25 = math.tanh %24 : vector<8x128xf32>
    %cst_6 = arith.constant 1.000000e+00 : f32
    %26 = vector.broadcast %cst_6 : f32 to vector<8x128xf32>
    %27 = arith.addf %25, %26 : vector<8x128xf32>
    %cst_7 = arith.constant 5.000000e-01 : f32
    %28 = vector.broadcast %cst_7 : f32 to vector<8x128xf32>
    %29 = arith.mulf %28, %27 : vector<8x128xf32>
    %30 = vector.broadcast %6 : f32 to vector<8x128xf32>
    %31 = arith.mulf %1, %30 : vector<8x128xf32>
    %32 = vector.broadcast %7 : f32 to vector<8x128xf32>
    %33 = arith.mulf %3, %32 : vector<8x128xf32>
    %34 = arith.addf %31, %33 : vector<8x128xf32>
    %35 = vector.broadcast %9 : f32 to vector<8x128xf32>
    %36 = arith.addf %34, %35 : vector<8x128xf32>
    %cst_8 = arith.constant 5.000000e-01 : f32
    %37 = vector.broadcast %cst_8 : f32 to vector<8x128xf32>
    %38 = arith.mulf %37, %36 : vector<8x128xf32>
    %39 = math.tanh %38 : vector<8x128xf32>
    %cst_9 = arith.constant 1.000000e+00 : f32
    %40 = vector.broadcast %cst_9 : f32 to vector<8x128xf32>
    %41 = arith.addf %39, %40 : vector<8x128xf32>
    %cst_10 = arith.constant 5.000000e-01 : f32
    %42 = vector.broadcast %cst_10 : f32 to vector<8x128xf32>
    %43 = arith.mulf %42, %41 : vector<8x128xf32>
    %44 = vector.broadcast %10 : f32 to vector<8x128xf32>
    %45 = arith.mulf %29, %44 : vector<8x128xf32>
    %46 = vector.broadcast %11 : f32 to vector<8x128xf32>
    %47 = arith.mulf %43, %46 : vector<8x128xf32>
    %48 = arith.addf %45, %47 : vector<8x128xf32>
    %49 = vector.broadcast %14 : f32 to vector<8x128xf32>
    %50 = arith.addf %48, %49 : vector<8x128xf32>
    %cst_11 = arith.constant 5.000000e-01 : f32
    %51 = vector.broadcast %cst_11 : f32 to vector<8x128xf32>
    %52 = arith.mulf %51, %50 : vector<8x128xf32>
    %53 = math.tanh %52 : vector<8x128xf32>
    %cst_12 = arith.constant 1.000000e+00 : f32
    %54 = vector.broadcast %cst_12 : f32 to vector<8x128xf32>
    %55 = arith.addf %53, %54 : vector<8x128xf32>
    %cst_13 = arith.constant 5.000000e-01 : f32
    %56 = vector.broadcast %cst_13 : f32 to vector<8x128xf32>
    %57 = arith.mulf %56, %55 : vector<8x128xf32>
    %58 = vector.broadcast %12 : f32 to vector<8x128xf32>
    %59 = arith.mulf %29, %58 : vector<8x128xf32>
    %60 = vector.broadcast %13 : f32 to vector<8x128xf32>
    %61 = arith.mulf %43, %60 : vector<8x128xf32>
    %62 = arith.addf %59, %61 : vector<8x128xf32>
    %63 = vector.broadcast %15 : f32 to vector<8x128xf32>
    %64 = arith.addf %62, %63 : vector<8x128xf32>
    %cst_14 = arith.constant 5.000000e-01 : f32
    %65 = vector.broadcast %cst_14 : f32 to vector<8x128xf32>
    %66 = arith.mulf %65, %64 : vector<8x128xf32>
    %67 = math.tanh %66 : vector<8x128xf32>
    %cst_15 = arith.constant 1.000000e+00 : f32
    %68 = vector.broadcast %cst_15 : f32 to vector<8x128xf32>
    %69 = arith.addf %67, %68 : vector<8x128xf32>
    %cst_16 = arith.constant 5.000000e-01 : f32
    %70 = vector.broadcast %cst_16 : f32 to vector<8x128xf32>
    %71 = arith.mulf %70, %69 : vector<8x128xf32>
    %c0_17 = arith.constant 0 : index
    %c0_18 = arith.constant 0 : index
    %c0_19 = arith.constant 0 : index
    %72 = vector.load %arg3[%c0_17, %c0_18, %c0_19] : memref<2x8x128xf32, #tpu.memory_space<vmem>>, vector<1x8x128xf32>
    %73 = vector.shape_cast %72 : vector<1x8x128xf32> to vector<8x128xf32>
    %74 = vector.shape_cast %57 : vector<8x128xf32> to vector<1x8x128xf32>
    tpu.vector_store %arg3[%c0_17, %c0_18, %c0_19], %74 {strides = array<i32>} : memref<2x8x128xf32, #tpu.memory_space<vmem>>, vector<1x8x128xf32>,
    %c1_20 = arith.constant 1 : index
    %c0_21 = arith.constant 0 : index
    %c0_22 = arith.constant 0 : index
    %75 = vector.load %arg3[%c1_20, %c0_21, %c0_22] : memref<2x8x128xf32, #tpu.memory_space<vmem>>, vector<1x8x128xf32>
    %76 = vector.shape_cast %75 : vector<1x8x128xf32> to vector<8x128xf32>
    %77 = vector.shape_cast %71 : vector<8x128xf32> to vector<1x8x128xf32>
    tpu.vector_store %arg3[%c1_20, %c0_21, %c0_22], %77 {strides = array<i32>} : memref<2x8x128xf32, #tpu.memory_space<vmem>>, vector<1x8x128xf32>,
    return
  }
  func.func @transform_0(%arg0: i32) -> i32 {
    %c0_i32 = arith.constant 0 : i32
    %c0_i32_0 = arith.constant 0 : i32
    return %c0_i32 : i32
  }
  func.func @transform_1(%arg0: i32) -> (i32, i32, i32) {
    %c0_i32 = arith.constant 0 : i32
    %c0_i32_0 = arith.constant 0 : i32
    %c0_i32_1 = arith.constant 0 : i32
    return %c0_i32, %arg0, %c0_i32_0 : i32, i32, i32
  }
  func.func @transform_2(%arg0: i32) -> (i32, i32, i32) {
    %c0_i32 = arith.constant 0 : i32
    %c0_i32_0 = arith.constant 0 : i32
    %c0_i32_1 = arith.constant 0 : i32
    return %c0_i32, %arg0, %c0_i32_0 : i32, i32, i32
  }
}

</mosaic_0001>

<llo_original>
// kernel: tpu_custom_call.1
$region0: #{tpu_custom_call.1}
  #allocation0 [shape = 'u32[]', space=smem, size = 0x4, offset = 0x4, fixed_abs, tag = 'smem constant byte address 0x4 - core index']
  #allocation1 [shape = 'u32[144,128]{1,0:T(1,128)}', space=vmem, size = 0x12000, scoped, tag = 'internal scratch']
  %s0 = inlined_call_operand.hbm [shape: f32[12], index: 0, kind: input, shape index: {}]
  %s1 = inlined_call_operand.hbm [shape: f32[2,8,128], index: 1, kind: input, shape index: {}]
  %s2 = inlined_call_operand.hbm [shape: f32[2,8,128], index: 2, kind: output, shape index: {}]
  %s3 = sld [smem:[#allocation0]]
  $region26: #{tpu_custom_call.1} parent=0
    _
  %s5 = ssub.s32 1, %s3
  %s6 = scalar_select 0, %s5, %s3
  $region1: #{tpu_custom_call.1} parent=0
    #allocation2 [shape = 'u8[512]{0}', space=smem, size = 0x200, scoped, tag = 'input window, operand 0, single buffered']
    #allocation3 [shape = 's32[1]{0}', space=sflag, size = 0x4, scoped, tag = 'scoped memory for tpu_custom_call.1']
    #allocation4 [shape = 's32[1]{0}', space=sflag, size = 0x4, scoped, tag = 'scoped memory for tpu_custom_call.1']
    #allocation5 [shape = 's32[1]{0}', space=sflag, size = 0x4, scoped, tag = 'scoped memory for tpu_custom_call.1']
    #allocation6 [shape = 'u8[8192]{0}', space=vmem, size = 0x2000, scoped, tag = 'input window, operand 1, single buffered']
    #allocation7 [shape = 'u8[8192]{0}', space=vmem, size = 0x2000, scoped, tag = 'output window, operand 0, single buffered']
    %7 = vsyncpa [#allocation5], 0
    %8 = vsyncpa [#allocation3], 0
    %9 = vsyncpa [#allocation4], 0
    // Predicated region
    $region2: #{tpu_custom_call.1} parent=1 // pred_check
      _
    $region3: #{tpu_custom_call.1} parent=1 // pred_check_branch
      %11 = sbr.rel (0) target = $region5
    $region4: #{tpu_custom_call.1} parent=1 // pred_region
      %s13 = ssub.s32 16, 16
      %14 = vsyncadd [#allocation5], %s13
      %17 = dma.hbm_to_smem %s0, 16, [#allocation2], [#allocation5]
    $region5: #{tpu_custom_call.1} parent=1 // pred_fallthru
      _
    // Predicated region
    $region6: #{tpu_custom_call.1} parent=1 // pred_check
      _
    $region7: #{tpu_custom_call.1} parent=1 // pred_check_branch
      %19 = sbr.rel (0) target = $region9
    $region8: #{tpu_custom_call.1} parent=1 // pred_region
      %s21 = ssub.s32 256, 256
      %22 = vsyncadd [#allocation3], %s21
      %s23 = sshll.u32 [#allocation6], 4
      %s24 = int_to_ptr.vmem [resolvable:$true] %s23
      %29 = dma.hbm_to_vmem [thread:$0]  %s1, 256, %s24, [#allocation3], 128, 128, 8
    $region9: #{tpu_custom_call.1} parent=1 // pred_fallthru
      _
    // Predicated region
    $region10: #{tpu_custom_call.1} parent=1 // pred_check
      _
    $region11: #{tpu_custom_call.1} parent=1 // pred_check_branch
      %31 = sbr.rel (0) target = $region13
    $region12: #{tpu_custom_call.1} parent=1 // pred_region
      %32 = dma.done [#allocation5], 16
    $region13: #{tpu_custom_call.1} parent=1 // pred_fallthru
      _
    // Predicated region
    $region14: #{tpu_custom_call.1} parent=1 // pred_check
      _
    $region15: #{tpu_custom_call.1} parent=1 // pred_check_branch
      %34 = sbr.rel (0) target = $region17
    $region16: #{tpu_custom_call.1} parent=1 // pred_region
      %35 = dma.done [#allocation3], 256
    $region17: #{tpu_custom_call.1} parent=1 // pred_fallthru
      _
    %36 = sfence
    %v37 = vld [vmem:[#allocation6] sm:$0xff]
    %s38 = scalar_lea.vmem [#allocation6], 8
    %v39 = vld [vmem:[%s38] sm:$0xff]
    %s40 = sld [smem:[#allocation2]]
    %s41 = sld [smem:[#allocation2 + $0x1]]
    %s42 = sld [smem:[#allocation2 + $0x2]]
    %s43 = sld [smem:[#allocation2 + $0x3]]
    %s44 = sld [smem:[#allocation2 + $0x4]]
    %s45 = sld [smem:[#allocation2 + $0x5]]
    %s46 = sld [smem:[#allocation2 + $0x6]]
    %s47 = sld [smem:[#allocation2 + $0x7]]
    %s48 = sld [smem:[#allocation2 + $0x8]]
    %s49 = sld [smem:[#allocation2 + $0x9]]
    %s50 = sld [smem:[#allocation2 + $0xa]]
    %s51 = sld [smem:[#allocation2 + $0xb]]
    %v52 = vstv %s40
    %v53 = vmul.f32 %v37, %v52
    %v54 = vstv %s41
    %v55 = vmul.f32 %v39, %v54
    %v56 = vadd.f32 %v53, %v55
    %v57 = vstv %s44
    %v58 = vadd.f32 %v56, %v57
    %v59 = vmul.f32 %v58, 0.5
    %v60 = vtanh.pop %v59
    %v61 = vadd.f32 %v60, 1.0
    %v62 = vmul.f32 %v61, 0.5
    %v63 = vstv %s42
    %v64 = vmul.f32 %v37, %v63
    %v65 = vstv %s43
    %v66 = vmul.f32 %v39, %v65
    %v67 = vadd.f32 %v64, %v66
    %v68 = vstv %s45
    %v69 = vadd.f32 %v67, %v68
    %v70 = vmul.f32 %v69, 0.5
    %v71 = vtanh.pop %v70
    %v72 = vadd.f32 %v71, 1.0
    %v73 = vmul.f32 %v72, 0.5
    %v74 = vstv %s46
    %v75 = vmul.f32 %v62, %v74
    %v76 = vstv %s47
    %v77 = vmul.f32 %v73, %v76
    %v78 = vadd.f32 %v75, %v77
    %v79 = vstv %s50
    %v80 = vadd.f32 %v78, %v79
    %v81 = vmul.f32 %v80, 0.5
    %v82 = vtanh.pop %v81
    %v83 = vadd.f32 %v82, 1.0
    %v84 = vmul.f32 %v83, 0.5
    %v85 = vstv %s48
    %v86 = vmul.f32 %v62, %v85
    %v87 = vstv %s49
    %v88 = vmul.f32 %v73, %v87
    %v89 = vadd.f32 %v86, %v88
    %v90 = vstv %s51
    %v91 = vadd.f32 %v89, %v90
    %v92 = vmul.f32 %v91, 0.5
    %v93 = vtanh.pop %v92
    %v94 = vadd.f32 %v93, 1.0
    %v95 = vmul.f32 %v94, 0.5
    %96 = vst [vmem:[#allocation7] sm:$0xff] %v84
    %s97 = scalar_lea.vmem [#allocation7], 8
    %98 = vst [vmem:[%s97] sm:$0xff] %v95
    // Predicated region
    $region18: #{tpu_custom_call.1} parent=1 // pred_check
      _
    $region19: #{tpu_custom_call.1} parent=1 // pred_check_branch
      %100 = sbr.rel (0) target = $region21
    $region20: #{tpu_custom_call.1} parent=1 // pred_region
      %s102 = ssub.s32 256, 256
      %103 = vsyncadd [#allocation4], %s102
      %s104 = sshll.u32 [#allocation7], 4
      %s105 = int_to_ptr.vmem [resolvable:$true] %s104
      %110 = dma.vmem_to_hbm [thread:$0]  %s105, 256, %s2, [#allocation4], 128, 128, 8
    $region21: #{tpu_custom_call.1} parent=1 // pred_fallthru
      _
    // Predicated region
    $region22: #{tpu_custom_call.1} parent=1 // pred_check
      _
    $region23: #{tpu_custom_call.1} parent=1 // pred_check_branch
      %112 = sbr.rel (0) target = $region25
    $region24: #{tpu_custom_call.1} parent=1 // pred_region
      %113 = dma.done [#allocation4], 256
    $region25: #{tpu_custom_call.1} parent=1 // pred_fallthru
      _
    %114 = vsyncpa [#allocation3], 1
    %115 = vsyncpa [#allocation4], 1
    %116 = vsyncpa [#allocation5], 1

</llo_original>
